<compile_context>
chip_gen: v7x
topology: tpu7x:2x2x1
jax: 0.10.0
libtpu: 0.0.40
codegen_flags: <defaults>
</compile_context>

<pallas_src>
import jax
import jax.numpy as jnp
from jax.experimental import pallas as pl
from jax.experimental.pallas import tpu as pltpu

_D_OUT = 2  # the module always emits [x1, x2] on the last axis


def _fused_update_kernel(pattern_ref, expand_ref, z_ref, out_ref):
    """Write one lane-dense tile of the flattened (N, B, 2) output.

    pattern_ref: (1, 128)            resident; lane l -> x[b,1] (d==0) or x2[b] (d==1)
    expand_ref : (n_per_row, 128)    resident 0/1 matrix; scatters z to d==0 lanes
    z_ref      : (tile_rows, n_per_row)  this tile's samples
    out_ref    : (tile_rows, 128)    tile of the (N*B*2) buffer viewed as 128-lane rows
    """
    z_lanes = jnp.dot(z_ref[...], expand_ref[...],
                      preferred_element_type=jnp.float32)   # MXU (otherwise idle)
    out_ref[...] = (pattern_ref[...] + z_lanes).astype(out_ref.dtype)


def polynomial_update(x, z, *, tile_rows=4096, min_kernel_elems=1 << 16,
                      force_kernel=False, out_dtype=None):
    """x: (B, D) state (D >= 2), z: (N, 1) or (N,) noise -> (N, B, 2) updated states."""
    x = jnp.asarray(x)
    z_flat = jnp.reshape(jnp.asarray(z), (-1,))
    B, D = x.shape
    N = z_flat.shape[0]
    if out_dtype is None:
        out_dtype = jnp.promote_types(x.dtype, z_flat.dtype)  # pin dtype explicitly

    # Compute in f32 (matches torch's f32 buffers / type promotion).
    xf = x.astype(jnp.float32)
    zf = z_flat.astype(jnp.float32)
    x1_col = xf[:, 1]                                        # (B,)  N-independent
    x2_row = xf[:, 0] ** 3 / 3.0 - jnp.sum(xf, axis=-1)      # (B,)  N-independent

    bd = B * _D_OUT
    n_per_row = 128 // bd if (bd <= 128 and 128 % bd == 0) else 0
    use_kernel = (
        n_per_row > 0
        and N > 0
        and N % n_per_row == 0
        and (force_kernel or N * B >= min_kernel_elems)
    )

    if not use_kernel:
        # Tiny-N / incompatible-shape fallback: pallas_call's fixed cost (grid
        # setup, DMA descriptors, ~us) would dominate; plain XLA is optimal.
        x1 = x1_col[None, :] + zf[:, None]                       # (N, B)
        x2 = jnp.broadcast_to(x2_row[None, :], (N, B))           # (N, B)
        return jnp.stack([x1, x2], axis=-1).astype(out_dtype)    # (N, B, 2)

    rows_total = N // n_per_row     # flat (N, B, 2) buffer == (rows_total, 128)

    # Resident pattern row: lane l -> x[b, 1] if d == 0 else x2[b].
    pattern16 = jnp.stack([x1_col, x2_row], axis=-1).reshape(-1)      # (2B,)
    pattern = jnp.tile(pattern16, n_per_row).reshape(1, 128)          # (1, 128) f32

    # Constant scatter matrix: E[c, l] = 1  iff  l // (2B) == c  and  l % 2 == 0.
    lane = jnp.arange(128)
    col = jnp.arange(n_per_row)
    expand = ((lane[None, :] // bd == col[:, None])
              & (lane[None, :] % _D_OUT == 0)).astype(jnp.float32)    # (n_per_row, 128)

    z2d = zf.reshape(rows_total, n_per_row)                           # (rows_total, n_per_row)

    # Tile selection: ~2 MiB output blocks; force >= 2 grid steps whenever
    # possible so the "parallel" axis feeds both v7x TensorCores.  `sub` keeps
    # the row-tile a multiple of the sublane packing for the output dtype.
    sub = 8 * max(1, 4 // jnp.dtype(out_dtype).itemsize)
    if rows_total > tile_rows:
        tr = max(sub, (tile_rows // sub) * sub)
    elif rows_total >= 2 * sub:
        tr = sub * pl.cdiv(pl.cdiv(rows_total, 2), sub)   # >= 2 steps
    else:
        tr = rows_total                                   # single full-array block
    grid = (pl.cdiv(rows_total, tr),)

    out2d = pl.pallas_call(
        _fused_update_kernel,
        out_shape=jax.ShapeDtypeStruct((rows_total, 128), out_dtype),
        grid_spec=pl.GridSpec(
            grid=grid,
            in_specs=[
                pl.BlockSpec((1, 128), lambda i: (0, 0)),            # pattern (resident)
                pl.BlockSpec((n_per_row, 128), lambda i: (0, 0)),    # expand  (resident)
                pl.BlockSpec((tr, n_per_row), lambda i: (i, 0)),     # z row tiles
            ],
            out_specs=pl.BlockSpec((tr, 128), lambda i: (i, 0)),
        ),
        compiler_params=pltpu.CompilerParams(
            dimension_semantics=("parallel",),   # megacore: shard row tiles across TCs (v7x)
        ),
    )(pattern, expand, z2d)

    # Free, contiguous row-major reshape (bitcast) into the module's layout.
    return out2d.reshape(N, B, _D_OUT)


if __name__ == "__main__":
    sigma = 0.1
    num_samples = 4096     # N (kept modest for the demo; kernel path forced below)
    batch = 8              # B
    state_dim = 2          # D (the polynomial system is 2-D)

    key = jax.random.PRNGKey(0)
    kx, kz = jax.random.split(key)
    x = jax.random.normal(kx, (batch, state_dim), dtype=jnp.float32)
    # TODO(synk): the PyTorch forward() resamples z on every call; here z is the
    # module's registered buffer, sampled once in-script (deterministic stand-in).
    z = sigma * jax.random.normal(kz, (num_samples, 1), dtype=jnp.float32)

    out = jax.block_until_ready(polynomial_update(x, z, force_kernel=True))

    # Pure-JAX reference mirroring the PyTorch broadcasting exactly.
    x1_ref = x[:, 1] + z                                        # (N, B)
    x2_ref = x[:, 0] ** 3 / 3.0 - x.sum(axis=-1)                # (B,)
    ref = jnp.stack([x1_ref, jnp.broadcast_to(x2_ref, x1_ref.shape)], axis=-1)

    assert out.shape == (num_samples, batch, _D_OUT), out.shape
    assert out.dtype == ref.dtype, (out.dtype, ref.dtype)
    assert jnp.allclose(out, ref, atol=1e-6, rtol=1e-6)

    # Tiny-N path (pure-jnp fallback; same semantics).
    out_small = jax.block_until_ready(polynomial_update(x, z[:16]))
    assert jnp.allclose(out_small, ref[:16], atol=1e-6, rtol=1e-6)

    print("KERNEL_OK")
</pallas_src>

<mosaic_0001>
module attributes {stable_mosaic.version = 11 : i64} {
  func.func @_fused_update_kernel(%arg0: i32, %arg1: memref<1x128xf32, #tpu.memory_space<vmem>>, %arg2: memref<8x128xf32, #tpu.memory_space<vmem>>, %arg3: memref<256x8xf32, #tpu.memory_space<vmem>>, %arg4: memref<256x128xf32, #tpu.memory_space<vmem>>) attributes {dimension_semantics = [#tpu.dimension_semantics<parallel>], iteration_bounds = array<i64: 2>, scalar_prefetch = 0 : i64, scratch_operands = 0 : i64, tpu.core_type = #tpu.core_type<tc>, window_params = [{pipeline_mode = #tpu.pipeline_mode<synchronous>, transform_indices = @transform_0, window_bounds = array<i64: 1, 128>}, {pipeline_mode = #tpu.pipeline_mode<synchronous>, transform_indices = @transform_1, window_bounds = array<i64: 8, 128>}, {transform_indices = @transform_2, window_bounds = array<i64: 256, 8>}, {transform_indices = @transform_3, window_bounds = array<i64: 256, 128>}]} {
    %c0 = arith.constant 0 : index
    %c0_0 = arith.constant 0 : index
    %0 = vector.load %arg3[%c0, %c0_0] : memref<256x8xf32, #tpu.memory_space<vmem>>, vector<256x8xf32>
    %c0_1 = arith.constant 0 : index
    %c0_2 = arith.constant 0 : index
    %1 = vector.load %arg2[%c0_1, %c0_2] : memref<8x128xf32, #tpu.memory_space<vmem>>, vector<8x128xf32>
    %cst = arith.constant dense<0.000000e+00> : vector<256x128xf32>
    %2 = tpu.matmul %0, %1, %cst {dimension_numbers = #tpu.dot_dimension_numbers<[1], [0], [0], [1], [0, 0, 1, 1], [], []>} : vector<256x8xf32>, vector<8x128xf32>, vector<256x128xf32> -> vector<256x128xf32>
    %c0_3 = arith.constant 0 : index
    %c0_4 = arith.constant 0 : index
    %3 = vector.load %arg1[%c0_3, %c0_4] : memref<1x128xf32, #tpu.memory_space<vmem>>, vector<1x128xf32>
    %4 = vector.broadcast %3 : vector<1x128xf32> to vector<256x128xf32>
    %5 = arith.addf %4, %2 : vector<256x128xf32>
    %c0_5 = arith.constant 0 : index
    %c0_6 = arith.constant 0 : index
    %6 = vector.load %arg4[%c0_5, %c0_6] : memref<256x128xf32, #tpu.memory_space<vmem>>, vector<256x128xf32>
    tpu.vector_store %arg4[%c0_5, %c0_6], %5 {strides = array<i32>} : memref<256x128xf32, #tpu.memory_space<vmem>>, vector<256x128xf32>,
    return
  }
  func.func @transform_0(%arg0: i32) -> (i32, i32) {
    %c0_i32 = arith.constant 0 : i32
    %c0_i32_0 = arith.constant 0 : i32
    %c0_i32_1 = arith.constant 0 : i32
    return %c0_i32, %c0_i32_0 : i32, i32
  }
  func.func @transform_1(%arg0: i32) -> (i32, i32) {
    %c0_i32 = arith.constant 0 : i32
    %c0_i32_0 = arith.constant 0 : i32
    %c0_i32_1 = arith.constant 0 : i32
    return %c0_i32, %c0_i32_0 : i32, i32
  }
  func.func @transform_2(%arg0: i32) -> (i32, i32) {
    %c0_i32 = arith.constant 0 : i32
    %c0_i32_0 = arith.constant 0 : i32
    return %arg0, %c0_i32 : i32, i32
  }
  func.func @transform_3(%arg0: i32) -> (i32, i32) {
    %c0_i32 = arith.constant 0 : i32
    %c0_i32_0 = arith.constant 0 : i32
    return %arg0, %c0_i32 : i32, i32
  }
}

</mosaic_0001>

<llo_original>
// kernel: tpu_custom_call.1
$region0: #{tpu_custom_call.1}
  #allocation0 [shape = 'u32[]', space=smem, size = 0x4, offset = 0x4, fixed_abs, tag = 'smem constant byte address 0x4 - core index']
  #allocation1 [shape = 'u32[144,128]{1,0:T(1,128)}', space=vmem, size = 0x12000, scoped, tag = 'internal scratch']
  %s0 = inlined_call_operand.vmem [shape: f32[1,128], index: 0, kind: input, shape index: {}]
  %s1 = inlined_call_operand.vmem [shape: f32[8,128], index: 1, kind: input, shape index: {}]
  %s2 = inlined_call_operand.vmem [shape: f32[512,8], index: 2, kind: input, shape index: {}]
  %s3 = inlined_call_operand.hbm [shape: f32[512,128], index: 3, kind: output, shape index: {}]
  %s4 = sld [smem:[#allocation0]]
  $region45: #{tpu_custom_call.1} parent=0
    _
  %s6 = ssub.s32 1, %s4
  %s7 = scalar_select 0, %s6, %s4
  $region1: #{tpu_custom_call.1} parent=0
    #allocation2 [shape = 'u8[262144]{0}', space=vmem, size = 0x40000, scoped, tag = 'output window, operand 0']
    #allocation3 [shape = 's32[2]{0}', space=sflag, size = 0x8, scoped, tag = 'scoped memory for tpu_custom_call.1']
    %8 = vsyncpa [#allocation3], 0
    %s9 = scalar_lea.sflag [#allocation3], 1
    %10 = vsyncpa %s9, 0
    loop: start=0, step=1, limit=4
    $region2: #{tpu_custom_call.1} parent=1 // loop_pre_header
      _
    $region3: #{tpu_custom_call.1} parent=1 // loop_header
      %s12 = sphi 0, %s16
      %p13 = scmp.ge.s32.totalorder %s12, 4
      %s20 = sphi 0, %s20
      %s22 = sphi 0, %s20
      %s23 = sphi 0, %s22
      %s37 = sphi 0, %s23
      %s41 = sphi 0, %s41
      %s43 = sphi 0, %s41
      %s44 = sphi 0, %s43
      %s58 = sphi 0, %s44
      %s64 = sphi 0, %s66
      %s67 = sphi 0, %s64
      %s68 = sphi 0, %s67
      %s84 = sphi 0, %s68
      %s90 = sphi 0, %s92
      %s93 = sphi 0, %s90
      %s94 = sphi 0, %s93
      %s110 = sphi 0, %s94
    $region4: #{tpu_custom_call.1} parent=1 // loop_header_branch
      %15 = sbr.rel (%p13) target = $region8
    $region5: #{tpu_custom_call.1} parent=1 // loop_body
      %s17 = ssub.s32 %s12, 1
      %s18 = ssub.s32 %s12, 2
      %s19 = sadd.s32 %s12, 1
      %s21 = sadd.s32 %s20, 1
      %p24 = scmp.eq.s32.totalorder %s12, 1
      %p25 = scmp.ne.s32.totalorder %s20, %s22
      %p26 = scmp.eq.s32.totalorder %s12, 0
      %p27 = por %p25, %p26
      %p28 = scmp.ne.s32.totalorder %s20, %s22
      %p29 = scmp.eq.s32.totalorder %s17, 1
      %p30 = por %p28, %p29
      %p31 = scmp.ne.s32.totalorder %s22, %s23
      %p32 = scmp.eq.s32.totalorder %s17, 0
      %p33 = por %p31, %p32
      %p34 = scmp.ne.s32.totalorder %s22, %s23
      %p35 = scmp.eq.s32.totalorder %s18, 1
      %p36 = por %p34, %p35
      %p38 = scmp.ne.s32.totalorder %s23, %s37
      %p39 = scmp.eq.s32.totalorder %s18, 0
      %p40 = por %p38, %p39
      %s42 = sadd.s32 %s41, 1
      %p45 = scmp.eq.s32.totalorder %s12, 1
      %p46 = scmp.ne.s32.totalorder %s41, %s43
      %p47 = scmp.eq.s32.totalorder %s12, 0
      %p48 = por %p46, %p47
      %p49 = scmp.ne.s32.totalorder %s41, %s43
      %p50 = scmp.eq.s32.totalorder %s17, 1
      %p51 = por %p49, %p50
      %p52 = scmp.ne.s32.totalorder %s43, %s44
      %p53 = scmp.eq.s32.totalorder %s17, 0
      %p54 = por %p52, %p53
      %p55 = scmp.ne.s32.totalorder %s43, %s44
      %p56 = scmp.eq.s32.totalorder %s18, 1
      %p57 = por %p55, %p56
      %p59 = scmp.ne.s32.totalorder %s44, %s58
      %p60 = scmp.eq.s32.totalorder %s18, 0
      %p61 = por %p59, %p60
      %s62 = ssub.s32 %s12, %s19
      %p63 = scmp.eq.s32.totalorder %s62, 0
      %s65 = sadd.s32 %s64, 1
      %s66 = scalar_select %p63, %s64, %s65
      %p69 = pneg %p63
      %p70 = scmp.eq.s32.totalorder %s12, 1
      %p71 = por %p69, %p70
      %p72 = scmp.ne.s32.totalorder %s64, %s67
      %p73 = scmp.eq.s32.totalorder %s12, 0
      %p74 = por %p72, %p73
      %p75 = scmp.ne.s32.totalorder %s64, %s67
      %p76 = scmp.eq.s32.totalorder %s17, 1
      %p77 = por %p75, %p76
      %p78 = scmp.ne.s32.totalorder %s67, %s68
      %p79 = scmp.eq.s32.totalorder %s17, 0
      %p80 = por %p78, %p79
      %p81 = scmp.ne.s32.totalorder %s67, %s68
      %p82 = scmp.eq.s32.totalorder %s18, 1
      %p83 = por %p81, %p82
      %p85 = scmp.ne.s32.totalorder %s68, %s84
      %p86 = scmp.eq.s32.totalorder %s18, 0
      %p87 = por %p85, %p86
      %s88 = ssub.s32 %s12, %s19
      %p89 = scmp.eq.s32.totalorder %s88, 0
      %s91 = sadd.s32 %s90, 1
      %s92 = scalar_select %p89, %s90, %s91
      %p95 = pneg %p89
      %p96 = scmp.eq.s32.totalorder %s12, 1
      %p97 = por %p95, %p96
      %p98 = scmp.ne.s32.totalorder %s90, %s93
      %p99 = scmp.eq.s32.totalorder %s12, 0
      %p100 = por %p98, %p99
      %p101 = scmp.ne.s32.totalorder %s90, %s93
      %p102 = scmp.eq.s32.totalorder %s17, 1
      %p103 = por %p101, %p102
      %p104 = scmp.ne.s32.totalorder %s93, %s94
      %p105 = scmp.eq.s32.totalorder %s17, 0
      %p106 = por %p104, %p105
      %p107 = scmp.ne.s32.totalorder %s93, %s94
      %p108 = scmp.eq.s32.totalorder %s18, 1
      %p109 = por %p107, %p108
      %p111 = scmp.ne.s32.totalorder %s94, %s110
      %p112 = scmp.eq.s32.totalorder %s18, 0
      %p113 = por %p111, %p112
      %p114 = scmp.le.s32.totalorder 1, %s12
      %p115 = scmp.lt.s32.totalorder %s12, 3
      %p116 = pnand %p114, %p115
      %p117 = pneg %p116
      // Predicated region
      $region9: #{tpu_custom_call.1} parent=5 // pred_check
        _
      $region10: #{tpu_custom_call.1} parent=5 // pred_check_branch
        %119 = sbr.rel (%p116) target = $region12
      $region11: #{tpu_custom_call.1} parent=5 // pred_region
        %s120 = ssub.s32 %s12, 1
        // Predicated region
        $region13: #{tpu_custom_call.1} parent=11 // pred_check
          %p121 = pneg %p33
        $region14: #{tpu_custom_call.1} parent=11 // pred_check_branch
          %123 = sbr.rel (%p121) target = $region16
        $region15: #{tpu_custom_call.1} parent=11 // pred_region
          _
        $region16: #{tpu_custom_call.1} parent=11 // pred_fallthru
          _
        // Predicated region
        $region17: #{tpu_custom_call.1} parent=11 // pred_check
          %p124 = pneg %p54
        $region18: #{tpu_custom_call.1} parent=11 // pred_check_branch
          %126 = sbr.rel (%p124) target = $region20
        $region19: #{tpu_custom_call.1} parent=11 // pred_region
          _
        $region20: #{tpu_custom_call.1} parent=11 // pred_fallthru
          _
      $region12: #{tpu_custom_call.1} parent=5 // pred_fallthru
        _
      %p127 = scmp.lt.s32.totalorder %s12, 2
      // Predicated region
      $region21: #{tpu_custom_call.1} parent=5 // pred_check
        %p128 = pneg %p127
      $region22: #{tpu_custom_call.1} parent=5 // pred_check_branch
        %130 = sbr.rel (%p128) target = $region24
      $region23: #{tpu_custom_call.1} parent=5 // pred_region
        // Predicated region
        $region25: #{tpu_custom_call.1} parent=23 // pred_check
          %p131 = pneg %p74
        $region26: #{tpu_custom_call.1} parent=23 // pred_check_branch
          %133 = sbr.rel (%p131) target = $region28
        $region27: #{tpu_custom_call.1} parent=23 // pred_region
          %s134 = smul.u32 32, %s12
          %p135 = scmp.lt.s32.totalorder %s134, 63
          %s136 = scalar_select %p135, %s134, 63
          %s137 = smul.addr %s136, 8
          %s138 = scalar_lea.vmem %s2, %s137
          %s139 = smul.u32 32, %s12
        $region28: #{tpu_custom_call.1} parent=23 // pred_fallthru
          _
      $region24: #{tpu_custom_call.1} parent=5 // pred_fallthru
        _
      %p140 = scmp.le.s32.totalorder 1, %s12
      %p141 = scmp.lt.s32.totalorder %s12, 3
      %p142 = pnand %p140, %p141
      %p143 = pneg %p142
      // Predicated region
      $region29: #{tpu_custom_call.1} parent=5 // pred_check
        _
      $region30: #{tpu_custom_call.1} parent=5 // pred_check_branch
        %145 = sbr.rel (%p142) target = $region32
      $region31: #{tpu_custom_call.1} parent=5 // pred_region
        %s146 = ssub.s32 %s12, 1
        %p147 = pneg %p33
        %p148 = pneg %p30
        %p149 = pneg %p54
        %p150 = pneg %p51
        %s151 = smul.u32 32, %s17
        %p152 = scmp.lt.s32.totalorder %s151, 63
        %s153 = scalar_select %p152, %s151, 63
        %s154 = smul.addr %s153, 8
        %s155 = scalar_lea.vmem %s2, %s154
        %p156 = pneg %p80
        %p157 = pneg %p77
        %p158 = pneg %p106
        %p159 = pneg %p103
        %s160 = sand.u32 %s93, 1
        %s161 = scalar_lea.sflag [#allocation3], %s160
        %s162 = sand.u32 %s93, 1
        %s163 = smul.addr %s162, 256
        %s164 = scalar_lea.vmem [#allocation2], %s163
        %s165 = smul.u32 32, %s17
        %p166 = scmp.lt.s32.totalorder %s165, 63
        %s167 = scalar_select %p166, %s165, 63
        %s168 = smul.addr %s167, 8
        %s169 = scalar_lea.vmem %s2, %s168
        %s170 = smul.u32 32, %s17
        %s171 = smul.u32 32, %s17
        %v172 = vld [vmem:[%s169] sm:$0xff]
        %v173 = vld [vmem:[%s169 + $0x8] sm:$0xff]
        %v174 = vld [vmem:[%s169 + $0x10] sm:$0xff]
        %v175 = vld [vmem:[%s169 + $0x18] sm:$0xff]
        %v176 = vld [vmem:[%s169 + $0x20] sm:$0xff]
        %v177 = vld [vmem:[%s169 + $0x28] sm:$0xff]
        %v178 = vld [vmem:[%s169 + $0x30] sm:$0xff]
        %v179 = vld [vmem:[%s169 + $0x38] sm:$0xff]
        %v180 = vld [vmem:[%s169 + $0x40] sm:$0xff]
        %v181 = vld [vmem:[%s169 + $0x48] sm:$0xff]
        %v182 = vld [vmem:[%s169 + $0x50] sm:$0xff]
        %v183 = vld [vmem:[%s169 + $0x58] sm:$0xff]
        %v184 = vld [vmem:[%s169 + $0x60] sm:$0xff]
        %v185 = vld [vmem:[%s169 + $0x68] sm:$0xff]
        %v186 = vld [vmem:[%s169 + $0x70] sm:$0xff]
        %v187 = vld [vmem:[%s169 + $0x78] sm:$0xff]
        %v188 = vld [vmem:[%s169 + $0x80] sm:$0xff]
        %v189 = vld [vmem:[%s169 + $0x88] sm:$0xff]
        %v190 = vld [vmem:[%s169 + $0x90] sm:$0xff]
        %v191 = vld [vmem:[%s169 + $0x98] sm:$0xff]
        %v192 = vld [vmem:[%s169 + $0xa0] sm:$0xff]
        %v193 = vld [vmem:[%s169 + $0xa8] sm:$0xff]
        %v194 = vld [vmem:[%s169 + $0xb0] sm:$0xff]
        %v195 = vld [vmem:[%s169 + $0xb8] sm:$0xff]
        %v196 = vld [vmem:[%s169 + $0xc0] sm:$0xff]
        %v197 = vld [vmem:[%s169 + $0xc8] sm:$0xff]
        %v198 = vld [vmem:[%s169 + $0xd0] sm:$0xff]
        %v199 = vld [vmem:[%s169 + $0xd8] sm:$0xff]
        %v200 = vld [vmem:[%s169 + $0xe0] sm:$0xff]
        %v201 = vld [vmem:[%s169 + $0xe8] sm:$0xff]
        %v202 = vld [vmem:[%s169 + $0xf0] sm:$0xff]
        %v203 = vld [vmem:[%s169 + $0xf8] sm:$0xff]
        %v204 = vld [vmem:[%s1] sm:$0xff]
        %vm205 = vcmask 64512
        %v207 = vsel %vm205, %v172, 0
        %v210 = vsel %vm205, %v173, 0
        %v213 = vsel %vm205, %v174, 0
        %v216 = vsel %vm205, %v175, 0
        %v219 = vsel %vm205, %v176, 0
        %v222 = vsel %vm205, %v177, 0
        %v225 = vsel %vm205, %v178, 0
        %v228 = vsel %vm205, %v179, 0
        %v231 = vsel %vm205, %v180, 0
        %v234 = vsel %vm205, %v181, 0
        %v237 = vsel %vm205, %v182, 0
        %v240 = vsel %vm205, %v183, 0
        %v243 = vsel %vm205, %v184, 0
        %v246 = vsel %vm205, %v185, 0
        %v249 = vsel %vm205, %v186, 0
        %v252 = vsel %vm205, %v187, 0
        %v255 = vsel %vm205, %v188, 0
        %v258 = vsel %vm205, %v189, 0
        %v261 = vsel %vm205, %v190, 0
        %v264 = vsel %vm205, %v191, 0
        %v267 = vsel %vm205, %v192, 0
        %v270 = vsel %vm205, %v193, 0
        %v273 = vsel %vm205, %v194, 0
        %v276 = vsel %vm205, %v195, 0
        %v279 = vsel %vm205, %v196, 0
        %v282 = vsel %vm205, %v197, 0
        %v285 = vsel %vm205, %v198, 0
        %v288 = vsel %vm205, %v199, 0
        %v291 = vsel %vm205, %v200, 0
        %v294 = vsel %vm205, %v201, 0
        %v297 = vsel %vm205, %v202, 0
        %v300 = vsel %vm205, %v203, 0
        %302 = vmatprep.subr.mxu0 0.0
        %303 = vmatpush1.msra.mxu0 %v204
        %304 = vmatprep.subr.mxu0 0.0
        %305 = vmatpush1.msra.mxu0 0.0
        %306 = vmatprep.subr.mxu0 0.0
        %307 = vmatpush1.msra.mxu0 0.0
        %308 = vmatprep.subr.mxu0 0.0
        %309 = vmatpush1.msra.mxu0 0.0
        %310 = vmatprep.subr.mxu0 0.0
        %311 = vmatpush1.msra.mxu0 0.0
        %312 = vmatprep.subr.mxu0 0.0
        %313 = vmatpush1.msra.mxu0 0.0
        %314 = vmatprep.subr.mxu0 0.0
        %315 = vmatpush1.msra.mxu0 0.0
        %316 = vmatprep.subr.mxu0 0.0
        %317 = vmatpush1.msra.mxu0 0.0
        %318 = vmatprep.subr.mxu0 0.0
        %319 = vmatpush1.msra.mxu0 0.0
        %320 = vmatprep.subr.mxu0 0.0
        %321 = vmatpush1.msra.mxu0 0.0
        %322 = vmatprep.subr.mxu0 0.0
        %323 = vmatpush1.msra.mxu0 0.0
        %324 = vmatprep.subr.mxu0 0.0
        %325 = vmatpush1.msra.mxu0 0.0
        %326 = vmatprep.subr.mxu0 0.0
        %327 = vmatpush1.msra.mxu0 0.0
        %328 = vmatprep.subr.mxu0 0.0
        %329 = vmatpush1.msra.mxu0 0.0
        %330 = vmatprep.subr.mxu0 0.0
        %331 = vmatpush1.msra.mxu0 0.0
        %332 = vmatprep.subr.mxu0 0.0
        %333 = vmatpush1.msra.mxu0 0.0
        %334 = vmatprep.subr.mxu0 0.0
        %335 = vmatpush1.msra.mxu0 0.0
        %336 = vmatprep.subr.mxu0 0.0
        %337 = vmatpush1.msra.mxu0 0.0
        %338 = vmatprep.subr.mxu0 0.0
        %339 = vmatpush1.msra.mxu0 0.0
        %340 = vmatprep.subr.mxu0 0.0
        %341 = vmatpush1.msra.mxu0 0.0
        %342 = vmatprep.subr.mxu0 0.0
        %343 = vmatpush1.msra.mxu0 0.0
        %344 = vmatprep.subr.mxu0 0.0
        %345 = vmatpush1.msra.mxu0 0.0
        %346 = vmatprep.subr.mxu0 0.0
        %347 = vmatpush1.msra.mxu0 0.0
        %348 = vmatprep.subr.mxu0 0.0
        %349 = vmatpush1.msra.mxu0 0.0
        %350 = vmatprep.subr.mxu0 0.0
        %351 = vmatpush1.msra.mxu0 0.0
        %352 = vmatprep.subr.mxu0 0.0
        %353 = vmatpush1.msra.mxu0 0.0
        %354 = vmatprep.subr.mxu0 0.0
        %355 = vmatpush1.msra.mxu0 0.0
        %356 = vmatprep.subr.mxu0 0.0
        %357 = vmatpush1.msra.mxu0 0.0
        %358 = vmatprep.subr.mxu0 0.0
        %359 = vmatpush1.msra.mxu0 0.0
        %360 = vmatprep.subr.mxu0 0.0
        %361 = vmatpush1.msra.mxu0 0.0
        %362 = vmatprep.subr.mxu0 0.0
        %363 = vmatpush1.msra.mxu0 0.0
        %364 = vmatprep.subr.mxu0 0.0
        %365 = vmatpush1.msra.mxu0 0.0
        %366 = vmatprep.mubr.f32.mxu0 0.0
        %367 = vmatmul.mubr.f32.gmra.mrb[0].mxu0 %v207
        %v368 = vpop.f32.mrb[0].mxu0
        %v369 = vadd.f32 0.0, %v368
        %v370 = vpop.f32.mrb[0].mxu0
        %371 = vmatprep.mubr.f32.mxu0 0.0
        %372 = vmatmul.mubr.f32.gmra.mrb[0].mxu0 %v210
        %v373 = vpop.f32.mrb[0].mxu0
        %v374 = vadd.f32 0.0, %v373
        %v375 = vpop.f32.mrb[0].mxu0
        %376 = vmatprep.mubr.f32.mxu0 0.0
        %377 = vmatmul.mubr.f32.gmra.mrb[0].mxu0 %v213
        %v378 = vpop.f32.mrb[0].mxu0
        %v379 = vadd.f32 0.0, %v378
        %v380 = vpop.f32.mrb[0].mxu0
        %381 = vmatprep.mubr.f32.mxu0 0.0
        %382 = vmatmul.mubr.f32.gmra.mrb[0].mxu0 %v216
        %v383 = vpop.f32.mrb[0].mxu0
        %v384 = vadd.f32 0.0, %v383
        %v385 = vpop.f32.mrb[0].mxu0
        %386 = vmatprep.mubr.f32.mxu0 0.0
        %387 = vmatmul.mubr.f32.gmra.mrb[0].mxu0 %v219
        %v388 = vpop.f32.mrb[0].mxu0
        %v389 = vadd.f32 0.0, %v388
        %v390 = vpop.f32.mrb[0].mxu0
        %391 = vmatprep.mubr.f32.mxu0 0.0
        %392 = vmatmul.mubr.f32.gmra.mrb[0].mxu0 %v222
        %v393 = vpop.f32.mrb[0].mxu0
        %v394 = vadd.f32 0.0, %v393
        %v395 = vpop.f32.mrb[0].mxu0
        %396 = vmatprep.mubr.f32.mxu0 0.0
        %397 = vmatmul.mubr.f32.gmra.mrb[0].mxu0 %v225
        %v398 = vpop.f32.mrb[0].mxu0
        %v399 = vadd.f32 0.0, %v398
        %v400 = vpop.f32.mrb[0].mxu0
        %401 = vmatprep.mubr.f32.mxu0 0.0
        %402 = vmatmul.mubr.f32.gmra.mrb[0].mxu0 %v228
        %v403 = vpop.f32.mrb[0].mxu0
        %v404 = vadd.f32 0.0, %v403
        %v405 = vpop.f32.mrb[0].mxu0
        %406 = vmatprep.mubr.f32.mxu0 0.0
        %407 = vmatmul.mubr.f32.gmra.mrb[0].mxu0 %v231
        %v408 = vpop.f32.mrb[0].mxu0
        %v409 = vadd.f32 0.0, %v408
        %v410 = vpop.f32.mrb[0].mxu0
        %411 = vmatprep.mubr.f32.mxu0 0.0
        %412 = vmatmul.mubr.f32.gmra.mrb[0].mxu0 %v234
        %v413 = vpop.f32.mrb[0].mxu0
        %v414 = vadd.f32 0.0, %v413
        %v415 = vpop.f32.mrb[0].mxu0
        %416 = vmatprep.mubr.f32.mxu0 0.0
        %417 = vmatmul.mubr.f32.gmra.mrb[0].mxu0 %v237
        %v418 = vpop.f32.mrb[0].mxu0
        %v419 = vadd.f32 0.0, %v418
        %v420 = vpop.f32.mrb[0].mxu0
        %421 = vmatprep.mubr.f32.mxu0 0.0
        %422 = vmatmul.mubr.f32.gmra.mrb[0].mxu0 %v240
        %v423 = vpop.f32.mrb[0].mxu0
        %v424 = vadd.f32 0.0, %v423
        %v425 = vpop.f32.mrb[0].mxu0
        %426 = vmatprep.mubr.f32.mxu0 0.0
        %427 = vmatmul.mubr.f32.gmra.mrb[0].mxu0 %v243
        %v428 = vpop.f32.mrb[0].mxu0
        %v429 = vadd.f32 0.0, %v428
        %v430 = vpop.f32.mrb[0].mxu0
        %431 = vmatprep.mubr.f32.mxu0 0.0
        %432 = vmatmul.mubr.f32.gmra.mrb[0].mxu0 %v246
        %v433 = vpop.f32.mrb[0].mxu0
        %v434 = vadd.f32 0.0, %v433
        %v435 = vpop.f32.mrb[0].mxu0
        %436 = vmatprep.mubr.f32.mxu0 0.0
        %437 = vmatmul.mubr.f32.gmra.mrb[0].mxu0 %v249
        %v438 = vpop.f32.mrb[0].mxu0
        %v439 = vadd.f32 0.0, %v438
        %v440 = vpop.f32.mrb[0].mxu0
        %441 = vmatprep.mubr.f32.mxu0 0.0
        %442 = vmatmul.mubr.f32.gmra.mrb[0].mxu0 %v252
        %v443 = vpop.f32.mrb[0].mxu0
        %v444 = vadd.f32 0.0, %v443
        %v445 = vpop.f32.mrb[0].mxu0
        %446 = vmatprep.mubr.f32.mxu0 0.0
        %447 = vmatmul.mubr.f32.gmra.mrb[0].mxu0 %v255
        %v448 = vpop.f32.mrb[0].mxu0
        %v449 = vadd.f32 0.0, %v448
        %v450 = vpop.f32.mrb[0].mxu0
        %451 = vmatprep.mubr.f32.mxu0 0.0
        %452 = vmatmul.mubr.f32.gmra.mrb[0].mxu0 %v258
        %v453 = vpop.f32.mrb[0].mxu0
        %v454 = vadd.f32 0.0, %v453
        %v455 = vpop.f32.mrb[0].mxu0
        %456 = vmatprep.mubr.f32.mxu0 0.0
        %457 = vmatmul.mubr.f32.gmra.mrb[0].mxu0 %v261
        %v458 = vpop.f32.mrb[0].mxu0
        %v459 = vadd.f32 0.0, %v458
        %v460 = vpop.f32.mrb[0].mxu0
        %461 = vmatprep.mubr.f32.mxu0 0.0
        %462 = vmatmul.mubr.f32.gmra.mrb[0].mxu0 %v264
        %v463 = vpop.f32.mrb[0].mxu0
        %v464 = vadd.f32 0.0, %v463
        %v465 = vpop.f32.mrb[0].mxu0
        %466 = vmatprep.mubr.f32.mxu0 0.0
        %467 = vmatmul.mubr.f32.gmra.mrb[0].mxu0 %v267
        %v468 = vpop.f32.mrb[0].mxu0
        %v469 = vadd.f32 0.0, %v468
        %v470 = vpop.f32.mrb[0].mxu0
        %471 = vmatprep.mubr.f32.mxu0 0.0
        %472 = vmatmul.mubr.f32.gmra.mrb[0].mxu0 %v270
        %v473 = vpop.f32.mrb[0].mxu0
        %v474 = vadd.f32 0.0, %v473
        %v475 = vpop.f32.mrb[0].mxu0
        %476 = vmatprep.mubr.f32.mxu0 0.0
        %477 = vmatmul.mubr.f32.gmra.mrb[0].mxu0 %v273
        %v478 = vpop.f32.mrb[0].mxu0
        %v479 = vadd.f32 0.0, %v478
        %v480 = vpop.f32.mrb[0].mxu0
        %481 = vmatprep.mubr.f32.mxu0 0.0
        %482 = vmatmul.mubr.f32.gmra.mrb[0].mxu0 %v276
        %v483 = vpop.f32.mrb[0].mxu0
        %v484 = vadd.f32 0.0, %v483
        %v485 = vpop.f32.mrb[0].mxu0
        %486 = vmatprep.mubr.f32.mxu0 0.0
        %487 = vmatmul.mubr.f32.gmra.mrb[0].mxu0 %v279
        %v488 = vpop.f32.mrb[0].mxu0
        %v489 = vadd.f32 0.0, %v488
        %v490 = vpop.f32.mrb[0].mxu0
        %491 = vmatprep.mubr.f32.mxu0 0.0
        %492 = vmatmul.mubr.f32.gmra.mrb[0].mxu0 %v282
        %v493 = vpop.f32.mrb[0].mxu0
        %v494 = vadd.f32 0.0, %v493
        %v495 = vpop.f32.mrb[0].mxu0
        %496 = vmatprep.mubr.f32.mxu0 0.0
        %497 = vmatmul.mubr.f32.gmra.mrb[0].mxu0 %v285
        %v498 = vpop.f32.mrb[0].mxu0
        %v499 = vadd.f32 0.0, %v498
        %v500 = vpop.f32.mrb[0].mxu0
        %501 = vmatprep.mubr.f32.mxu0 0.0
        %502 = vmatmul.mubr.f32.gmra.mrb[0].mxu0 %v288
        %v503 = vpop.f32.mrb[0].mxu0
        %v504 = vadd.f32 0.0, %v503
        %v505 = vpop.f32.mrb[0].mxu0
        %506 = vmatprep.mubr.f32.mxu0 0.0
        %507 = vmatmul.mubr.f32.gmra.mrb[0].mxu0 %v291
        %v508 = vpop.f32.mrb[0].mxu0
        %v509 = vadd.f32 0.0, %v508
        %v510 = vpop.f32.mrb[0].mxu0
        %511 = vmatprep.mubr.f32.mxu0 0.0
        %512 = vmatmul.mubr.f32.gmra.mrb[0].mxu0 %v294
        %v513 = vpop.f32.mrb[0].mxu0
        %v514 = vadd.f32 0.0, %v513
        %v515 = vpop.f32.mrb[0].mxu0
        %516 = vmatprep.mubr.f32.mxu0 0.0
        %517 = vmatmul.mubr.f32.gmra.mrb[0].mxu0 %v297
        %v518 = vpop.f32.mrb[0].mxu0
        %v519 = vadd.f32 0.0, %v518
        %v520 = vpop.f32.mrb[0].mxu0
        %521 = vmatprep.mubr.f32.mxu0 0.0
        %522 = vmatmul.mubr.f32.gmra.mrb[0].mxu0 %v300
        %v523 = vpop.f32.mrb[0].mxu0
        %v524 = vadd.f32 0.0, %v523
        %v525 = vpop.f32.mrb[0].mxu0
        %526 = vdwg.mxu0
        %v527 = vld [vmem:[%s0] sm:$0x1]
        %v529 = vlaneseq
        %v530 = vshrl.u32 %v529, 7
        %v531 = vsub.s32 0, %v530
        %v532 = vrot.slane %v527, %v531
        %v534 = vadd.f32 %v532, %v369
        %v535 = vadd.f32 %v532, %v374
        %v536 = vadd.f32 %v532, %v379
        %v537 = vadd.f32 %v532, %v384
        %v538 = vadd.f32 %v532, %v389
        %v539 = vadd.f32 %v532, %v394
        %v540 = vadd.f32 %v532, %v399
        %v541 = vadd.f32 %v532, %v404
        %v542 = vadd.f32 %v532, %v409
        %v543 = vadd.f32 %v532, %v414
        %v544 = vadd.f32 %v532, %v419
        %v545 = vadd.f32 %v532, %v424
        %v546 = vadd.f32 %v532, %v429
        %v547 = vadd.f32 %v532, %v434
        %v548 = vadd.f32 %v532, %v439
        %v549 = vadd.f32 %v532, %v444
        %v550 = vadd.f32 %v532, %v449
        %v551 = vadd.f32 %v532, %v454
        %v552 = vadd.f32 %v532, %v459
        %v553 = vadd.f32 %v532, %v464
        %v554 = vadd.f32 %v532, %v469
        %v555 = vadd.f32 %v532, %v474
        %v556 = vadd.f32 %v532, %v479
        %v557 = vadd.f32 %v532, %v484
        %v558 = vadd.f32 %v532, %v489
        %v559 = vadd.f32 %v532, %v494
        %v560 = vadd.f32 %v532, %v499
        %v561 = vadd.f32 %v532, %v504
        %v562 = vadd.f32 %v532, %v509
        %v563 = vadd.f32 %v532, %v514
        %v564 = vadd.f32 %v532, %v519
        %v565 = vadd.f32 %v532, %v524
        %566 = vst [vmem:[%s164] sm:$0xff] %v534
        %567 = vst [vmem:[%s164 + $0x8] sm:$0xff] %v535
        %568 = vst [vmem:[%s164 + $0x10] sm:$0xff] %v536
        %569 = vst [vmem:[%s164 + $0x18] sm:$0xff] %v537
        %570 = vst [vmem:[%s164 + $0x20] sm:$0xff] %v538
        %571 = vst [vmem:[%s164 + $0x28] sm:$0xff] %v539
        %572 = vst [vmem:[%s164 + $0x30] sm:$0xff] %v540
        %573 = vst [vmem:[%s164 + $0x38] sm:$0xff] %v541
        %574 = vst [vmem:[%s164 + $0x40] sm:$0xff] %v542
        %575 = vst [vmem:[%s164 + $0x48] sm:$0xff] %v543
        %576 = vst [vmem:[%s164 + $0x50] sm:$0xff] %v544
        %577 = vst [vmem:[%s164 + $0x58] sm:$0xff] %v545
        %578 = vst [vmem:[%s164 + $0x60] sm:$0xff] %v546
        %579 = vst [vmem:[%s164 + $0x68] sm:$0xff] %v547
        %580 = vst [vmem:[%s164 + $0x70] sm:$0xff] %v548
        %581 = vst [vmem:[%s164 + $0x78] sm:$0xff] %v549
        %582 = vst [vmem:[%s164 + $0x80] sm:$0xff] %v550
        %583 = vst [vmem:[%s164 + $0x88] sm:$0xff] %v551
        %584 = vst [vmem:[%s164 + $0x90] sm:$0xff] %v552
        %585 = vst [vmem:[%s164 + $0x98] sm:$0xff] %v553
        %586 = vst [vmem:[%s164 + $0xa0] sm:$0xff] %v554
        %587 = vst [vmem:[%s164 + $0xa8] sm:$0xff] %v555
        %588 = vst [vmem:[%s164 + $0xb0] sm:$0xff] %v556
        %589 = vst [vmem:[%s164 + $0xb8] sm:$0xff] %v557
        %590 = vst [vmem:[%s164 + $0xc0] sm:$0xff] %v558
        %591 = vst [vmem:[%s164 + $0xc8] sm:$0xff] %v559
        %592 = vst [vmem:[%s164 + $0xd0] sm:$0xff] %v560
        %593 = vst [vmem:[%s164 + $0xd8] sm:$0xff] %v561
        %594 = vst [vmem:[%s164 + $0xe0] sm:$0xff] %v562
        %595 = vst [vmem:[%s164 + $0xe8] sm:$0xff] %v563
        %596 = vst [vmem:[%s164 + $0xf0] sm:$0xff] %v564
        %597 = vst [vmem:[%s164 + $0xf8] sm:$0xff] %v565
        %s598 = sand.u32 %s93, 1
        %s599 = scalar_lea.sflag [#allocation3], %s598
        %s600 = sand.u32 %s93, 1
        %s601 = smul.addr %s600, 256
        %s602 = scalar_lea.vmem [#allocation2], %s601
        // Predicated region
        $region33: #{tpu_custom_call.1} parent=31 // pred_check
          %p603 = pneg %p103
        $region34: #{tpu_custom_call.1} parent=31 // pred_check_branch
          %605 = sbr.rel (%p603) target = $region36
        $region35: #{tpu_custom_call.1} parent=31 // pred_region
          %s606 = smul.u32 32, %s17
          %s608 = ssub.s32 4096, 4096
          %609 = vsyncadd %s599, %s608
          %s610 = smul.addr %s606, 128
          %s611 = scalar_lea.hbm %s3, %s610
          %s612 = sshll.u32 %s602, 4
          %s613 = int_to_ptr.vmem [resolvable:$true] %s612
          %618 = dma.vmem_to_hbm [thread:$0]  %s613, 4096, %s611, %s599, 128, 128, 8
        $region36: #{tpu_custom_call.1} parent=31 // pred_fallthru
          _
      $region32: #{tpu_custom_call.1} parent=5 // pred_fallthru
        _
      %p619 = scmp.le.s32.totalorder 2, %s12
      // Predicated region
      $region37: #{tpu_custom_call.1} parent=5 // pred_check
        %p620 = pneg %p619
      $region38: #{tpu_custom_call.1} parent=5 // pred_check_branch
        %622 = sbr.rel (%p620) target = $region40
      $region39: #{tpu_custom_call.1} parent=5 // pred_region
        %s623 = ssub.s32 %s12, 2
        // Predicated region
        $region41: #{tpu_custom_call.1} parent=39 // pred_check
          %p624 = pneg %p109
        $region42: #{tpu_custom_call.1} parent=39 // pred_check_branch
          %626 = sbr.rel (%p624) target = $region44
        $region43: #{tpu_custom_call.1} parent=39 // pred_region
          %s627 = sand.u32 %s94, 1
          %s628 = scalar_lea.sflag [#allocation3], %s627
          %s629 = sand.u32 %s94, 1
          %s630 = smul.addr %s629, 256
          %s631 = scalar_lea.vmem [#allocation2], %s630
          %632 = dma.done %s628, 4096
        $region44: #{tpu_custom_call.1} parent=39 // pred_fallthru
          _
      $region40: #{tpu_custom_call.1} parent=5 // pred_fallthru
        _
    $region6: #{tpu_custom_call.1} parent=1 // loop_footer
      %s16 = sadd.s32 1, %s12
    $region7: #{tpu_custom_call.1} parent=1 // loop_footer_branch
      %11 = sbr.rel target = $region3
    $region8: #{tpu_custom_call.1} parent=1 // loop_exit
      _
    %633 = vsyncpa [#allocation3], 1
    %s634 = scalar_lea.sflag [#allocation3], 1
    %635 = vsyncpa %s634, 1

</llo_original>
